<compile_context>
chip_gen: v7x
topology: tpu7x:2x2x1
jax: 0.10.0
libtpu: 0.0.40
codegen_flags: <defaults>
</compile_context>

<pallas_src>
import functools

import jax
import jax.numpy as jnp
import numpy as np
from jax.experimental import pallas as pl
from jax.experimental.pallas import tpu as pltpu

_LANE = 128
_BLOCK_BUDGET_BYTES = 12 << 20   # double-buffered in+out blocks, all gens safe


def _reference_concat(color, flow):
    """Pure-JAX fallback (degenerate / non-lane-divisible / pathological F*C)."""
    B, F, C, H, W = color.shape
    zeros = jnp.zeros((B, 1, 2, H, W), dtype=color.dtype)
    if F > 1:
        flow_full = jnp.concatenate([zeros, flow.astype(color.dtype)], axis=1)
    else:
        flow_full = zeros
    return jnp.concatenate([color, flow_full], axis=2)


def _extend_flow_kernel(color_ref, flow_ref, out_ref, *, n_color_ch):
    """One (batch, row-tile) block.

    color_ref: (1, F,   C,   tile_r, 128)
    flow_ref:  (1, F-1, 2,   tile_r, 128)
    out_ref:   (1, F,   C+2, tile_r, 128)

    All stores cover full (tile_r, 128) minor tiles (unmasked); the channel /
    frame dims are major block indices, so there is no sublane shifting.
    """
    # color channels for every frame
    out_ref[:, :, :n_color_ch] = color_ref[...]
    # frame 0 flow channels <- zeros  (torch.cat([zeros, flow], dim=1))
    out_ref[:, 0:1, n_color_ch:] = jnp.zeros(
        (1, 1) + flow_ref.shape[2:], out_ref.dtype)
    # frames 1..F-1 flow channels <- flow[f-1]
    out_ref[:, 1:, n_color_ch:] = flow_ref[...]


def _choose_tile_r(R, B, per_row_bytes):
    """Largest multiple-of-8 (or full-R) row tile within the block budget,
    split when B == 1 so a parallel grid axis has extent >= 2 (v7x)."""
    max_rows = max(1, _BLOCK_BUDGET_BYTES // per_row_bytes)
    if R <= max_rows:
        tile_r = R
    else:
        tile_r = max(8, (max_rows // 8) * 8)
    if B == 1 and tile_r == R and R >= 16:
        tile_r = ((R // 2 + 7) // 8) * 8      # multiple of 8, < R  ->  n_r >= 2
    return int(tile_r)


def extend_data_flow(color, flow):
    """Pallas equivalent of ExtendDataFlow.forward for the disk/no-warp config.

    color: [B, F, C, H, W]   flow: [B, F-1, 2, H, W]
    returns: [B, F, C+2, H, W]
    """
    B, F, C, H, W = color.shape
    assert flow.shape == (B, max(F - 1, 0), 2, H, W), flow.shape
    L = H * W

    if F == 1 or L % _LANE != 0:
        # Degenerate clip (no flow frames) or spatial size not 128-divisible.
        return _reference_concat(color, flow)

    # Keep the kernel a pure copy (matters on v5e for bf16): cast in wrapper.
    flow = flow.astype(color.dtype)

    R = L // _LANE
    itemsize = np.dtype(color.dtype).itemsize
    # Bytes per unit row of 128 lanes, double-buffered, in + out blocks.
    per_row = 2 * _LANE * itemsize * (F * C + (F - 1) * 2 + F * (C + 2))
    if per_row * min(R, 8) > _BLOCK_BUDGET_BYTES:
        # Pathologically many frames/channels per row tile; XLA concat is fine.
        return _reference_concat(color, flow)

    # Free reshapes: trailing dims are contiguous, L % 128 == 0.
    color_r = color.reshape(B, F, C, R, _LANE)
    flow_r = flow.reshape(B, F - 1, 2, R, _LANE)

    tile_r = _choose_tile_r(R, B, per_row)
    n_r = pl.cdiv(R, tile_r)
    footprint = per_row * tile_r                      # double-buffered blocks
    vmem_limit = int(footprint + (16 << 20))          # <= ~28 MiB: safe on v7x

    kernel = functools.partial(_extend_flow_kernel, n_color_ch=C)

    out_r = pl.pallas_call(
        kernel,
        out_shape=jax.ShapeDtypeStruct((B, F, C + 2, R, _LANE), color.dtype),
        grid_spec=pltpu.PrefetchScalarGridSpec(
            num_scalar_prefetch=0,
            grid=(B, n_r),
            in_specs=[
                pl.BlockSpec((1, F, C, tile_r, _LANE),
                             lambda b, r: (b, 0, 0, r, 0)),
                pl.BlockSpec((1, F - 1, 2, tile_r, _LANE),
                             lambda b, r: (b, 0, 0, r, 0)),
            ],
            out_specs=pl.BlockSpec((1, F, C + 2, tile_r, _LANE),
                                   lambda b, r: (b, 0, 0, r, 0)),
        ),
        compiler_params=pltpu.CompilerParams(
            dimension_semantics=("parallel", "parallel"),
            vmem_limit_bytes=vmem_limit,
        ),
    )(color_r, flow_r)

    return out_r.reshape(B, F, C + 2, H, W)


if __name__ == "__main__":
    key = jax.random.PRNGKey(0)
    B, F, C, H, W = 2, 4, 3, 16, 16
    k_color, k_flow = jax.random.split(key)

    # data['color'] and data['flow'] (flow_source='disk')
    color = jax.random.normal(k_color, (B, F, C, H, W), dtype=jnp.float32)
    flow = jax.random.normal(k_flow, (B, F - 1, 2, H, W), dtype=jnp.float32)

    out = jax.block_until_ready(extend_data_flow(color, flow))

    # Pure-JAX reference mirroring the PyTorch forward.
    zeros = jnp.zeros((B, 1, 2, H, W), dtype=color.dtype)
    flow_full = jnp.concatenate([zeros, flow], axis=1)          # cat dim=1
    ref = jnp.concatenate([color, flow_full], axis=2)           # cat dim=2

    assert out.shape == (B, F, C + 2, H, W), out.shape
    assert out.dtype == color.dtype
    assert jnp.allclose(out, ref), "mismatch vs reference"

    print("KERNEL_OK")
</pallas_src>

<mosaic_0001>
module attributes {stable_mosaic.version = 11 : i64} {
  func.func @_extend_flow_kernel(%arg0: i32, %arg1: i32, %arg2: memref<1x4x3x2x128xf32, #tpu.memory_space<vmem>>, %arg3: memref<1x3x2x2x128xf32, #tpu.memory_space<vmem>>, %arg4: memref<1x4x5x2x128xf32, #tpu.memory_space<vmem>>) attributes {dimension_semantics = [#tpu.dimension_semantics<parallel>, #tpu.dimension_semantics<parallel>], iteration_bounds = array<i64: 2, 1>, scalar_prefetch = 0 : i64, scratch_operands = 0 : i64, tpu.core_type = #tpu.core_type<tc>, window_params = [{transform_indices = @transform_0, window_bounds = array<i64: 1, 4, 3, 2, 128>}, {transform_indices = @transform_1, window_bounds = array<i64: 1, 3, 2, 2, 128>}, {transform_indices = @transform_2, window_bounds = array<i64: 1, 4, 5, 2, 128>}]} {
    %c0 = arith.constant 0 : index
    %c0_0 = arith.constant 0 : index
    %c0_1 = arith.constant 0 : index
    %c0_2 = arith.constant 0 : index
    %c0_3 = arith.constant 0 : index
    %0 = vector.load %arg2[%c0, %c0_0, %c0_1, %c0_2, %c0_3] : memref<1x4x3x2x128xf32, #tpu.memory_space<vmem>>, vector<1x4x3x2x128xf32>
    %c0_4 = arith.constant 0 : index
    %c0_5 = arith.constant 0 : index
    %c0_6 = arith.constant 0 : index
    %c0_7 = arith.constant 0 : index
    %c0_8 = arith.constant 0 : index
    %1 = vector.load %arg4[%c0_4, %c0_5, %c0_6, %c0_7, %c0_8] : memref<1x4x5x2x128xf32, #tpu.memory_space<vmem>>, vector<1x4x3x2x128xf32>
    tpu.vector_store %arg4[%c0_4, %c0_5, %c0_6, %c0_7, %c0_8], %0 {strides = array<i32>} : memref<1x4x5x2x128xf32, #tpu.memory_space<vmem>>, vector<1x4x3x2x128xf32>,
    %cst = arith.constant 0.000000e+00 : f32
    %2 = vector.broadcast %cst : f32 to vector<1x1x2x2x128xf32>
    %c0_9 = arith.constant 0 : index
    %c0_10 = arith.constant 0 : index
    %c3 = arith.constant 3 : index
    %c0_11 = arith.constant 0 : index
    %c0_12 = arith.constant 0 : index
    %3 = vector.load %arg4[%c0_9, %c0_10, %c3, %c0_11, %c0_12] : memref<1x4x5x2x128xf32, #tpu.memory_space<vmem>>, vector<1x1x2x2x128xf32>
    tpu.vector_store %arg4[%c0_9, %c0_10, %c3, %c0_11, %c0_12], %2 {strides = array<i32>} : memref<1x4x5x2x128xf32, #tpu.memory_space<vmem>>, vector<1x1x2x2x128xf32>,
    %c0_13 = arith.constant 0 : index
    %c0_14 = arith.constant 0 : index
    %c0_15 = arith.constant 0 : index
    %c0_16 = arith.constant 0 : index
    %c0_17 = arith.constant 0 : index
    %4 = vector.load %arg3[%c0_13, %c0_14, %c0_15, %c0_16, %c0_17] : memref<1x3x2x2x128xf32, #tpu.memory_space<vmem>>, vector<1x3x2x2x128xf32>
    %c0_18 = arith.constant 0 : index
    %c1 = arith.constant 1 : index
    %c3_19 = arith.constant 3 : index
    %c0_20 = arith.constant 0 : index
    %c0_21 = arith.constant 0 : index
    %5 = vector.load %arg4[%c0_18, %c1, %c3_19, %c0_20, %c0_21] : memref<1x4x5x2x128xf32, #tpu.memory_space<vmem>>, vector<1x3x2x2x128xf32>
    tpu.vector_store %arg4[%c0_18, %c1, %c3_19, %c0_20, %c0_21], %4 {strides = array<i32>} : memref<1x4x5x2x128xf32, #tpu.memory_space<vmem>>, vector<1x3x2x2x128xf32>,
    return
  }
  func.func @transform_0(%arg0: i32, %arg1: i32) -> (i32, i32, i32, i32, i32) {
    %c0_i32 = arith.constant 0 : i32
    %c0_i32_0 = arith.constant 0 : i32
    %c0_i32_1 = arith.constant 0 : i32
    %c0_i32_2 = arith.constant 0 : i32
    return %arg0, %c0_i32, %c0_i32_0, %arg1, %c0_i32_1 : i32, i32, i32, i32, i32
  }
  func.func @transform_1(%arg0: i32, %arg1: i32) -> (i32, i32, i32, i32, i32) {
    %c0_i32 = arith.constant 0 : i32
    %c0_i32_0 = arith.constant 0 : i32
    %c0_i32_1 = arith.constant 0 : i32
    %c0_i32_2 = arith.constant 0 : i32
    return %arg0, %c0_i32, %c0_i32_0, %arg1, %c0_i32_1 : i32, i32, i32, i32, i32
  }
  func.func @transform_2(%arg0: i32, %arg1: i32) -> (i32, i32, i32, i32, i32) {
    %c0_i32 = arith.constant 0 : i32
    %c0_i32_0 = arith.constant 0 : i32
    %c0_i32_1 = arith.constant 0 : i32
    %c0_i32_2 = arith.constant 0 : i32
    return %arg0, %c0_i32, %c0_i32_0, %arg1, %c0_i32_1 : i32, i32, i32, i32, i32
  }
}

</mosaic_0001>

<llo_original>
// kernel: tpu_custom_call.1
$region0: #{tpu_custom_call.1}
  #allocation0 [shape = 'u32[]', space=smem, size = 0x4, offset = 0x4, fixed_abs, tag = 'smem constant byte address 0x4 - core index']
  #allocation1 [shape = 'u32[144,128]{1,0:T(1,128)}', space=vmem, size = 0x12000, scoped, tag = 'internal scratch']
  %s0 = inlined_call_operand.hbm [shape: f32[2,4,3,2,128], index: 0, kind: input, shape index: {}]
  %s1 = inlined_call_operand.hbm [shape: f32[2,3,2,2,128], index: 1, kind: input, shape index: {}]
  %s2 = inlined_call_operand.hbm [shape: f32[2,4,5,2,128], index: 2, kind: output, shape index: {}]
  %s3 = sld [smem:[#allocation0]]
  $region49: #{tpu_custom_call.1} parent=0
    _
  %s5 = ssub.s32 1, %s3
  %s6 = scalar_select 0, %s5, %s3
  $region1: #{tpu_custom_call.1} parent=0
    #allocation2 [shape = 'u8[24576]{0}', space=vmem, size = 0x6000, scoped, tag = 'input window, operand 0']
    #allocation3 [shape = 's32[2]{0}', space=sflag, size = 0x8, scoped, tag = 'scoped memory for tpu_custom_call.1']
    #allocation4 [shape = 's32[2]{0}', space=sflag, size = 0x8, scoped, tag = 'scoped memory for tpu_custom_call.1']
    #allocation5 [shape = 'u8[12288]{0}', space=vmem, size = 0x3000, scoped, tag = 'input window, operand 1']
    #allocation6 [shape = 's32[2]{0}', space=sflag, size = 0x8, scoped, tag = 'scoped memory for tpu_custom_call.1']
    #allocation7 [shape = 'u8[40960]{0}', space=vmem, size = 0xa000, scoped, tag = 'output window, operand 0']
    %7 = vsyncpa [#allocation3], 0
    %s8 = scalar_lea.sflag [#allocation3], 1
    %9 = vsyncpa %s8, 0
    %10 = vsyncpa [#allocation6], 0
    %s11 = scalar_lea.sflag [#allocation6], 1
    %12 = vsyncpa %s11, 0
    %13 = vsyncpa [#allocation4], 0
    %s14 = scalar_lea.sflag [#allocation4], 1
    %15 = vsyncpa %s14, 0
    loop: start=0, step=1, limit=4
    $region2: #{tpu_custom_call.1} parent=1 // loop_pre_header
      _
    $region3: #{tpu_custom_call.1} parent=1 // loop_header
      %s17 = sphi 0, %s21
      %p18 = scmp.ge.s32.totalorder %s17, 4
      %s24 = sphi 0, %s36
      %s25 = sphi 0, %s32
      %s26 = sphi 0, %s24
      %s27 = sphi 0, %s25
      %s28 = sphi 0, %s26
      %s29 = sphi 0, %s27
      %s41 = sphi 0, %s43
      %s44 = sphi 0, %s41
      %s45 = sphi 0, %s44
      %s61 = sphi 0, %s45
      %s69 = sphi 0, %s71
      %s72 = sphi 0, %s69
      %s73 = sphi 0, %s72
      %s89 = sphi 0, %s73
      %s97 = sphi 0, %s99
      %s100 = sphi 0, %s97
      %s101 = sphi 0, %s100
      %s117 = sphi 0, %s101
    $region4: #{tpu_custom_call.1} parent=1 // loop_header_branch
      %20 = sbr.rel (%p18) target = $region8
    $region5: #{tpu_custom_call.1} parent=1 // loop_body
      %s22 = ssub.s32 %s17, 1
      %s23 = ssub.s32 %s17, 2
      %s30 = sadd.s32 1, %s25
      %p31 = scmp.ge.s32.totalorder %s30, 1
      %s32 = scalar_select %p31, 0, %s30
      %s33 = sadd.s32 1, %s24
      %s34 = scalar_select %p31, %s33, %s24
      %p35 = scmp.ge.s32.totalorder %s34, 2
      %s36 = scalar_select %p35, 0, %s34
      %s37 = ssub.s32 %s24, %s36
      %s38 = ssub.s32 %s25, %s32
      %s39 = sor.u32 %s37, %s38
      %p40 = scmp.eq.s32.totalorder %s39, 0
      %s42 = sadd.s32 %s41, 1
      %s43 = scalar_select %p40, %s41, %s42
      %p46 = pneg %p40
      %p47 = scmp.eq.s32.totalorder %s17, 1
      %p48 = por %p46, %p47
      %p49 = scmp.ne.s32.totalorder %s41, %s44
      %p50 = scmp.eq.s32.totalorder %s17, 0
      %p51 = por %p49, %p50
      %p52 = scmp.ne.s32.totalorder %s41, %s44
      %p53 = scmp.eq.s32.totalorder %s22, 1
      %p54 = por %p52, %p53
      %p55 = scmp.ne.s32.totalorder %s44, %s45
      %p56 = scmp.eq.s32.totalorder %s22, 0
      %p57 = por %p55, %p56
      %p58 = scmp.ne.s32.totalorder %s44, %s45
      %p59 = scmp.eq.s32.totalorder %s23, 1
      %p60 = por %p58, %p59
      %p62 = scmp.ne.s32.totalorder %s45, %s61
      %p63 = scmp.eq.s32.totalorder %s23, 0
      %p64 = por %p62, %p63
      %s65 = ssub.s32 %s24, %s36
      %s66 = ssub.s32 %s25, %s32
      %s67 = sor.u32 %s65, %s66
      %p68 = scmp.eq.s32.totalorder %s67, 0
      %s70 = sadd.s32 %s69, 1
      %s71 = scalar_select %p68, %s69, %s70
      %p74 = pneg %p68
      %p75 = scmp.eq.s32.totalorder %s17, 1
      %p76 = por %p74, %p75
      %p77 = scmp.ne.s32.totalorder %s69, %s72
      %p78 = scmp.eq.s32.totalorder %s17, 0
      %p79 = por %p77, %p78
      %p80 = scmp.ne.s32.totalorder %s69, %s72
      %p81 = scmp.eq.s32.totalorder %s22, 1
      %p82 = por %p80, %p81
      %p83 = scmp.ne.s32.totalorder %s72, %s73
      %p84 = scmp.eq.s32.totalorder %s22, 0
      %p85 = por %p83, %p84
      %p86 = scmp.ne.s32.totalorder %s72, %s73
      %p87 = scmp.eq.s32.totalorder %s23, 1
      %p88 = por %p86, %p87
      %p90 = scmp.ne.s32.totalorder %s73, %s89
      %p91 = scmp.eq.s32.totalorder %s23, 0
      %p92 = por %p90, %p91
      %s93 = ssub.s32 %s24, %s36
      %s94 = ssub.s32 %s25, %s32
      %s95 = sor.u32 %s93, %s94
      %p96 = scmp.eq.s32.totalorder %s95, 0
      %s98 = sadd.s32 %s97, 1
      %s99 = scalar_select %p96, %s97, %s98
      %p102 = pneg %p96
      %p103 = scmp.eq.s32.totalorder %s17, 1
      %p104 = por %p102, %p103
      %p105 = scmp.ne.s32.totalorder %s97, %s100
      %p106 = scmp.eq.s32.totalorder %s17, 0
      %p107 = por %p105, %p106
      %p108 = scmp.ne.s32.totalorder %s97, %s100
      %p109 = scmp.eq.s32.totalorder %s22, 1
      %p110 = por %p108, %p109
      %p111 = scmp.ne.s32.totalorder %s100, %s101
      %p112 = scmp.eq.s32.totalorder %s22, 0
      %p113 = por %p111, %p112
      %p114 = scmp.ne.s32.totalorder %s100, %s101
      %p115 = scmp.eq.s32.totalorder %s23, 1
      %p116 = por %p114, %p115
      %p118 = scmp.ne.s32.totalorder %s101, %s117
      %p119 = scmp.eq.s32.totalorder %s23, 0
      %p120 = por %p118, %p119
      %p121 = scmp.le.s32.totalorder 1, %s17
      %p122 = scmp.lt.s32.totalorder %s17, 3
      %p123 = pnand %p121, %p122
      %p124 = pneg %p123
      // Predicated region
      $region9: #{tpu_custom_call.1} parent=5 // pred_check
        _
      $region10: #{tpu_custom_call.1} parent=5 // pred_check_branch
        %126 = sbr.rel (%p123) target = $region12
      $region11: #{tpu_custom_call.1} parent=5 // pred_region
        %s127 = ssub.s32 %s17, 1
      $region12: #{tpu_custom_call.1} parent=5 // pred_fallthru
        _
      %p128 = scmp.lt.s32.totalorder %s17, 2
      // Predicated region
      $region13: #{tpu_custom_call.1} parent=5 // pred_check
        %p129 = pneg %p128
      $region14: #{tpu_custom_call.1} parent=5 // pred_check_branch
        %131 = sbr.rel (%p129) target = $region16
      $region15: #{tpu_custom_call.1} parent=5 // pred_region
        // Predicated region
        $region17: #{tpu_custom_call.1} parent=15 // pred_check
          %p132 = pneg %p51
        $region18: #{tpu_custom_call.1} parent=15 // pred_check_branch
          %134 = sbr.rel (%p132) target = $region20
        $region19: #{tpu_custom_call.1} parent=15 // pred_region
          %s135 = sand.u32 %s41, 1
          %s136 = scalar_lea.sflag [#allocation3], %s135
          %s137 = sand.u32 %s41, 1
          %s138 = smul.addr %s137, 24
          %s139 = scalar_lea.vmem [#allocation2], %s138
          %s141 = ssub.s32 384, 384
          %142 = vsyncadd %s136, %s141
          %s143 = smul.addr %s24, 12
          %s144 = sadd.s32 %s25, %s143
          %s145 = smul.addr %s144, 32
          %s146 = scalar_lea.hbm %s0, %s145
          %s147 = sshll.u32 %s139, 4
          %s148 = int_to_ptr.vmem [resolvable:$true] %s147
          %153 = dma.hbm_to_vmem [thread:$0]  %s146, 384, %s148, %s136, 32, 32, 2
        $region20: #{tpu_custom_call.1} parent=15 // pred_fallthru
          _
        // Predicated region
        $region21: #{tpu_custom_call.1} parent=15 // pred_check
          %p154 = pneg %p79
        $region22: #{tpu_custom_call.1} parent=15 // pred_check_branch
          %156 = sbr.rel (%p154) target = $region24
        $region23: #{tpu_custom_call.1} parent=15 // pred_region
          %s157 = sand.u32 %s69, 1
          %s158 = scalar_lea.sflag [#allocation6], %s157
          %s159 = sand.u32 %s69, 1
          %s160 = smul.addr %s159, 12
          %s161 = scalar_lea.vmem [#allocation5], %s160
          %s163 = ssub.s32 192, 192
          %164 = vsyncadd %s158, %s163
          %s165 = smul.addr %s24, 6
          %s166 = sadd.s32 %s25, %s165
          %s167 = smul.addr %s166, 32
          %s168 = scalar_lea.hbm %s1, %s167
          %s169 = sshll.u32 %s161, 4
          %s170 = int_to_ptr.vmem [resolvable:$true] %s169
          %175 = dma.hbm_to_vmem [thread:$0]  %s168, 192, %s170, %s158, 32, 32, 2
        $region24: #{tpu_custom_call.1} parent=15 // pred_fallthru
          _
      $region16: #{tpu_custom_call.1} parent=5 // pred_fallthru
        _
      %p176 = scmp.le.s32.totalorder 1, %s17
      %p177 = scmp.lt.s32.totalorder %s17, 3
      %p178 = pnand %p176, %p177
      %p179 = pneg %p178
      // Predicated region
      $region25: #{tpu_custom_call.1} parent=5 // pred_check
        _
      $region26: #{tpu_custom_call.1} parent=5 // pred_check_branch
        %181 = sbr.rel (%p178) target = $region28
      $region27: #{tpu_custom_call.1} parent=5 // pred_region
        %s182 = ssub.s32 %s17, 1
        %s183 = sand.u32 %s44, 1
        %s184 = scalar_lea.sflag [#allocation3], %s183
        %s185 = sand.u32 %s44, 1
        %s186 = smul.addr %s185, 24
        %s187 = scalar_lea.vmem [#allocation2], %s186
        // Predicated region
        $region29: #{tpu_custom_call.1} parent=27 // pred_check
          %p188 = pneg %p57
        $region30: #{tpu_custom_call.1} parent=27 // pred_check_branch
          %190 = sbr.rel (%p188) target = $region32
        $region31: #{tpu_custom_call.1} parent=27 // pred_region
          %191 = dma.done %s184, 384
        $region32: #{tpu_custom_call.1} parent=27 // pred_fallthru
          _
        %s192 = sand.u32 %s72, 1
        %s193 = scalar_lea.sflag [#allocation6], %s192
        %s194 = sand.u32 %s72, 1
        %s195 = smul.addr %s194, 12
        %s196 = scalar_lea.vmem [#allocation5], %s195
        // Predicated region
        $region33: #{tpu_custom_call.1} parent=27 // pred_check
          %p197 = pneg %p85
        $region34: #{tpu_custom_call.1} parent=27 // pred_check_branch
          %199 = sbr.rel (%p197) target = $region36
        $region35: #{tpu_custom_call.1} parent=27 // pred_region
          %200 = dma.done %s193, 192
        $region36: #{tpu_custom_call.1} parent=27 // pred_fallthru
          _
        %s201 = sand.u32 %s44, 1
        %s202 = scalar_lea.sflag [#allocation3], %s201
        %s203 = sand.u32 %s44, 1
        %s204 = smul.addr %s203, 24
        %s205 = scalar_lea.vmem [#allocation2], %s204
        %p206 = pneg %p57
        %p207 = pneg %p54
        %s208 = sand.u32 %s72, 1
        %s209 = scalar_lea.sflag [#allocation6], %s208
        %s210 = sand.u32 %s72, 1
        %s211 = smul.addr %s210, 12
        %s212 = scalar_lea.vmem [#allocation5], %s211
        %p213 = pneg %p85
        %p214 = pneg %p82
        %p215 = pneg %p113
        %p216 = pneg %p110
        %s217 = sand.u32 %s100, 1
        %s218 = scalar_lea.sflag [#allocation4], %s217
        %s219 = sand.u32 %s100, 1
        %s220 = smul.addr %s219, 40
        %s221 = scalar_lea.vmem [#allocation7], %s220
        %v222 = vld [vmem:[%s187] sm:$0x3]
        %v223 = vld [vmem:[%s187 + $0x2] sm:$0x3]
        %v224 = vld [vmem:[%s187 + $0x4] sm:$0x3]
        %v225 = vld [vmem:[%s187 + $0x6] sm:$0x3]
        %v226 = vld [vmem:[%s187 + $0x8] sm:$0x3]
        %v227 = vld [vmem:[%s187 + $0xa] sm:$0x3]
        %v228 = vld [vmem:[%s187 + $0xc] sm:$0x3]
        %v229 = vld [vmem:[%s187 + $0xe] sm:$0x3]
        %v230 = vld [vmem:[%s187 + $0x10] sm:$0x3]
        %v231 = vld [vmem:[%s187 + $0x12] sm:$0x3]
        %v232 = vld [vmem:[%s187 + $0x14] sm:$0x3]
        %v233 = vld [vmem:[%s187 + $0x16] sm:$0x3]
        %234 = vst [vmem:[%s221] sm:$0x3] %v222
        %235 = vst [vmem:[%s221 + $0x2] sm:$0x3] %v223
        %236 = vst [vmem:[%s221 + $0x4] sm:$0x3] %v224
        %237 = vst [vmem:[%s221 + $0xa] sm:$0x3] %v225
        %238 = vst [vmem:[%s221 + $0xc] sm:$0x3] %v226
        %239 = vst [vmem:[%s221 + $0xe] sm:$0x3] %v227
        %240 = vst [vmem:[%s221 + $0x14] sm:$0x3] %v228
        %241 = vst [vmem:[%s221 + $0x16] sm:$0x3] %v229
        %242 = vst [vmem:[%s221 + $0x18] sm:$0x3] %v230
        %243 = vst [vmem:[%s221 + $0x1e] sm:$0x3] %v231
        %244 = vst [vmem:[%s221 + $0x20] sm:$0x3] %v232
        %245 = vst [vmem:[%s221 + $0x22] sm:$0x3] %v233
        %s246 = scalar_lea.vmem %s221, 6 [#allocation7]
        %247 = vst [vmem:[%s246] sm:$0x3] 0.0
        %248 = vst [vmem:[%s246 + $0x2] sm:$0x3] 0.0
        %v249 = vld [vmem:[%s196] sm:$0x3]
        %v250 = vld [vmem:[%s196 + $0x2] sm:$0x3]
        %v251 = vld [vmem:[%s196 + $0x4] sm:$0x3]
        %v252 = vld [vmem:[%s196 + $0x6] sm:$0x3]
        %v253 = vld [vmem:[%s196 + $0x8] sm:$0x3]
        %v254 = vld [vmem:[%s196 + $0xa] sm:$0x3]
        %s255 = scalar_lea.vmem %s221, 16 [#allocation7]
        %256 = vst [vmem:[%s255] sm:$0x3] %v249
        %257 = vst [vmem:[%s255 + $0x2] sm:$0x3] %v250
        %258 = vst [vmem:[%s255 + $0xa] sm:$0x3] %v251
        %259 = vst [vmem:[%s255 + $0xc] sm:$0x3] %v252
        %260 = vst [vmem:[%s255 + $0x14] sm:$0x3] %v253
        %261 = vst [vmem:[%s255 + $0x16] sm:$0x3] %v254
        %s262 = sand.u32 %s100, 1
        %s263 = scalar_lea.sflag [#allocation4], %s262
        %s264 = sand.u32 %s100, 1
        %s265 = smul.addr %s264, 40
        %s266 = scalar_lea.vmem [#allocation7], %s265
        // Predicated region
        $region37: #{tpu_custom_call.1} parent=27 // pred_check
          %p267 = pneg %p110
        $region38: #{tpu_custom_call.1} parent=27 // pred_check_branch
          %269 = sbr.rel (%p267) target = $region40
        $region39: #{tpu_custom_call.1} parent=27 // pred_region
          %s271 = ssub.s32 640, 640
          %272 = vsyncadd %s263, %s271
          %s273 = smul.addr %s26, 20
          %s274 = sadd.s32 %s27, %s273
          %s275 = smul.addr %s274, 32
          %s276 = scalar_lea.hbm %s2, %s275
          %s277 = sshll.u32 %s266, 4
          %s278 = int_to_ptr.vmem [resolvable:$true] %s277
          %283 = dma.vmem_to_hbm [thread:$0]  %s278, 640, %s276, %s263, 32, 32, 2
        $region40: #{tpu_custom_call.1} parent=27 // pred_fallthru
          _
      $region28: #{tpu_custom_call.1} parent=5 // pred_fallthru
        _
      %p284 = scmp.le.s32.totalorder 2, %s17
      // Predicated region
      $region41: #{tpu_custom_call.1} parent=5 // pred_check
        %p285 = pneg %p284
      $region42: #{tpu_custom_call.1} parent=5 // pred_check_branch
        %287 = sbr.rel (%p285) target = $region44
      $region43: #{tpu_custom_call.1} parent=5 // pred_region
        %s288 = ssub.s32 %s17, 2
        // Predicated region
        $region45: #{tpu_custom_call.1} parent=43 // pred_check
          %p289 = pneg %p116
        $region46: #{tpu_custom_call.1} parent=43 // pred_check_branch
          %291 = sbr.rel (%p289) target = $region48
        $region47: #{tpu_custom_call.1} parent=43 // pred_region
          %s292 = sand.u32 %s101, 1
          %s293 = scalar_lea.sflag [#allocation4], %s292
          %s294 = sand.u32 %s101, 1
          %s295 = smul.addr %s294, 40
          %s296 = scalar_lea.vmem [#allocation7], %s295
          %297 = dma.done %s293, 640
        $region48: #{tpu_custom_call.1} parent=43 // pred_fallthru
          _
      $region44: #{tpu_custom_call.1} parent=5 // pred_fallthru
        _
    $region6: #{tpu_custom_call.1} parent=1 // loop_footer
      %s21 = sadd.s32 1, %s17
    $region7: #{tpu_custom_call.1} parent=1 // loop_footer_branch
      %16 = sbr.rel target = $region3
    $region8: #{tpu_custom_call.1} parent=1 // loop_exit
      _
    %298 = vsyncpa [#allocation3], 1
    %s299 = scalar_lea.sflag [#allocation3], 1
    %300 = vsyncpa %s299, 1
    %301 = vsyncpa [#allocation6], 1
    %s302 = scalar_lea.sflag [#allocation6], 1
    %303 = vsyncpa %s302, 1
    %304 = vsyncpa [#allocation4], 1
    %s305 = scalar_lea.sflag [#allocation4], 1
    %306 = vsyncpa %s305, 1

</llo_original>
